<compile_context>
chip_gen: v6e
topology: v6e:2x2x1
jax: 0.10.0
libtpu: 0.0.40
codegen_flags: <defaults>
</compile_context>

<pallas_src>
import jax
import jax.numpy as jnp
from jax.experimental import pallas as pl
from jax.experimental.pallas import tpu as pltpu


def _temporal_kernel(x_ref, w0_ref, w1_ref, w2_ref, b_ref, o_ref, xpad_ref):
    t = o_ref.shape[1]
    c_in = x_ref.shape[2]

    # Stage this batch's (T, C_in) tile into a (T+2, C_in) scratch with zero
    # halo rows. Scratch is uninitialized and per-core, so the halo rows are
    # (re)zeroed every step (cheap: two rows) — required because the parallel
    # grid axis may be split across TensorCores, each with its own scratch.
    zero_row = jnp.zeros((1, c_in), dtype=xpad_ref.dtype)
    xpad_ref[0:1, :] = zero_row
    xpad_ref[t + 1:t + 2, :] = zero_row
    xpad_ref[1:t + 1, :] = x_ref[0]

    # Three conv taps -> three MXU matmuls, accumulated in f32.
    y = jnp.dot(xpad_ref[0:t, :], w0_ref[...],
                preferred_element_type=jnp.float32)
    y = y + jnp.dot(xpad_ref[1:t + 1, :], w1_ref[...],
                    preferred_element_type=jnp.float32)
    y = y + jnp.dot(xpad_ref[2:t + 2, :], w2_ref[...],
                    preferred_element_type=jnp.float32)

    # Epilogue (bias + ReLU) stays in f32 on the VPU; cast only at the store.
    y = y + b_ref[...]
    o_ref[0] = jnp.maximum(y, 0.0).astype(o_ref.dtype)


@jax.jit
def temporal_forward(x, w, b):
    """Forward pass of `Temporal`.

    Args:
      x: (B, T, C_in) activations (the PyTorch forward input, pre-permute).
      w: (C_out, C_in, 3) Conv1d weight (PyTorch layout).
      b: (C_out,) Conv1d bias.
    Returns:
      (B, T, C_out) = relu(conv1d_k3_s1_p1(x)) with channels last.
    """
    bsz, t, c_in = x.shape
    c_out = w.shape[0]

    # Pre-transpose the three taps to (C_in, C_out) so the kernel does plain
    # row-major matmuls (tiny one-time op under jit).
    w0 = jnp.transpose(w[:, :, 0]).astype(x.dtype)
    w1 = jnp.transpose(w[:, :, 1]).astype(x.dtype)
    w2 = jnp.transpose(w[:, :, 2]).astype(x.dtype)
    b2 = b.astype(jnp.float32).reshape(1, c_out)

    itemsize = jnp.dtype(x.dtype).itemsize
    cost = pl.CostEstimate(
        flops=2 * bsz * t * c_in * c_out * 3 + 2 * bsz * t * c_out,
        transcendentals=0,
        bytes_accessed=(bsz * t * (c_in + c_out)) * itemsize
        + 3 * c_in * c_out * itemsize
        + c_out * 4,
    )

    return pl.pallas_call(
        _temporal_kernel,
        out_shape=jax.ShapeDtypeStruct((bsz, t, c_out), x.dtype),
        grid_spec=pltpu.PrefetchScalarGridSpec(
            num_scalar_prefetch=0,
            grid=(bsz,),
            in_specs=[
                pl.BlockSpec((1, t, c_in), lambda i: (i, 0, 0)),   # x slab
                pl.BlockSpec((c_in, c_out), lambda i: (0, 0)),     # W tap k=0
                pl.BlockSpec((c_in, c_out), lambda i: (0, 0)),     # W tap k=1
                pl.BlockSpec((c_in, c_out), lambda i: (0, 0)),     # W tap k=2
                pl.BlockSpec((1, c_out), lambda i: (0, 0)),        # bias
            ],
            out_specs=pl.BlockSpec((1, t, c_out), lambda i: (i, 0, 0)),
            scratch_shapes=[pltpu.VMEM((t + 2, c_in), x.dtype)],
        ),
        compiler_params=pltpu.CompilerParams(
            dimension_semantics=("parallel",)),
        cost_estimate=cost,
    )(x, w0, w1, w2, b2)


def init_params(key, input_size, out_size, dtype=jnp.float32):
    """PyTorch Conv1d default init: U(-1/sqrt(fan_in), +), fan_in = C_in * k."""
    kw, kb = jax.random.split(key)
    bound = 1.0 / jnp.sqrt(input_size * 3)
    w = jax.random.uniform(kw, (out_size, input_size, 3), dtype, -bound, bound)
    b = jax.random.uniform(kb, (out_size,), dtype, -bound, bound)
    return w, b


def _reference(x, w, b):
    """Pure-JAX reference: channels-last conv1d(k=3, p=1) + ReLU."""
    xp = jnp.pad(x, ((0, 0), (1, 1), (0, 0)))
    y = (jnp.einsum('btc,oc->bto', xp[:, :-2, :], w[:, :, 0])
         + jnp.einsum('btc,oc->bto', xp[:, 1:-1, :], w[:, :, 1])
         + jnp.einsum('btc,oc->bto', xp[:, 2:, :], w[:, :, 2])
         + b)
    return jnp.maximum(y, 0.0)


if __name__ == "__main__":
    key = jax.random.PRNGKey(0)
    kx, kp = jax.random.split(key)

    batch, seq, input_size, out_size = 2, 16, 32, 8
    x = jax.random.normal(kx, (batch, seq, input_size), dtype=jnp.float32)
    w, b = init_params(kp, input_size, out_size)

    out = temporal_forward(x, w, b)
    out = jax.block_until_ready(out)

    ref = _reference(x, w, b)
    assert out.shape == (batch, seq, out_size)
    assert jnp.allclose(out, ref, atol=1e-5, rtol=1e-5), "mismatch vs reference"

    print("KERNEL_OK")
</pallas_src>

<mosaic_0001>
module attributes {stable_mosaic.version = 11 : i64} {
  func.func @_temporal_kernel(%arg0: i32, %arg1: memref<1x16x32xf32, #tpu.memory_space<vmem>>, %arg2: memref<32x8xf32, #tpu.memory_space<vmem>>, %arg3: memref<32x8xf32, #tpu.memory_space<vmem>>, %arg4: memref<32x8xf32, #tpu.memory_space<vmem>>, %arg5: memref<1x8xf32, #tpu.memory_space<vmem>>, %arg6: memref<1x16x8xf32, #tpu.memory_space<vmem>>, %arg7: memref<18x32xf32, #tpu.memory_space<vmem>>) attributes {dimension_semantics = [#tpu.dimension_semantics<parallel>], iteration_bounds = array<i64: 2>, scalar_prefetch = 0 : i64, scratch_operands = 1 : i64, tpu.core_type = #tpu.core_type<tc>, window_params = [{transform_indices = @transform_0, window_bounds = array<i64: 1, 16, 32>}, {pipeline_mode = #tpu.pipeline_mode<synchronous>, transform_indices = @transform_1, window_bounds = array<i64: 32, 8>}, {pipeline_mode = #tpu.pipeline_mode<synchronous>, transform_indices = @transform_2, window_bounds = array<i64: 32, 8>}, {pipeline_mode = #tpu.pipeline_mode<synchronous>, transform_indices = @transform_3, window_bounds = array<i64: 32, 8>}, {pipeline_mode = #tpu.pipeline_mode<synchronous>, transform_indices = @transform_4, window_bounds = array<i64: 1, 8>}, {transform_indices = @transform_5, window_bounds = array<i64: 1, 16, 8>}]} {
    %cst = arith.constant 0.000000e+00 : f32
    %0 = vector.broadcast %cst : f32 to vector<1x32xf32>
    %c0 = arith.constant 0 : index
    %c0_0 = arith.constant 0 : index
    %1 = vector.load %arg7[%c0, %c0_0] : memref<18x32xf32, #tpu.memory_space<vmem>>, vector<1x32xf32>
    tpu.vector_store %arg7[%c0, %c0_0], %0 {strides = array<i32>} : memref<18x32xf32, #tpu.memory_space<vmem>>, vector<1x32xf32>,
    %c17 = arith.constant 17 : index
    %c0_1 = arith.constant 0 : index
    %2 = vector.load %arg7[%c17, %c0_1] : memref<18x32xf32, #tpu.memory_space<vmem>>, vector<1x32xf32>
    tpu.vector_store %arg7[%c17, %c0_1], %0 {strides = array<i32>} : memref<18x32xf32, #tpu.memory_space<vmem>>, vector<1x32xf32>,
    %c0_2 = arith.constant 0 : index
    %c0_3 = arith.constant 0 : index
    %c0_4 = arith.constant 0 : index
    %3 = vector.load %arg1[%c0_2, %c0_3, %c0_4] : memref<1x16x32xf32, #tpu.memory_space<vmem>>, vector<1x16x32xf32>
    %4 = vector.shape_cast %3 : vector<1x16x32xf32> to vector<16x32xf32>
    %c1 = arith.constant 1 : index
    %c0_5 = arith.constant 0 : index
    %5 = vector.load %arg7[%c1, %c0_5] : memref<18x32xf32, #tpu.memory_space<vmem>>, vector<16x32xf32>
    tpu.vector_store %arg7[%c1, %c0_5], %4 {strides = array<i32>} : memref<18x32xf32, #tpu.memory_space<vmem>>, vector<16x32xf32>,
    %c0_6 = arith.constant 0 : index
    %c0_7 = arith.constant 0 : index
    %6 = vector.load %arg7[%c0_6, %c0_7] : memref<18x32xf32, #tpu.memory_space<vmem>>, vector<16x32xf32>
    %c0_8 = arith.constant 0 : index
    %c0_9 = arith.constant 0 : index
    %7 = vector.load %arg2[%c0_8, %c0_9] : memref<32x8xf32, #tpu.memory_space<vmem>>, vector<32x8xf32>
    %cst_10 = arith.constant dense<0.000000e+00> : vector<16x8xf32>
    %8 = tpu.matmul %6, %7, %cst_10 {dimension_numbers = #tpu.dot_dimension_numbers<[1], [0], [0], [1], [0, 0, 1, 1], [], []>} : vector<16x32xf32>, vector<32x8xf32>, vector<16x8xf32> -> vector<16x8xf32>
    %c1_11 = arith.constant 1 : index
    %c0_12 = arith.constant 0 : index
    %9 = vector.load %arg7[%c1_11, %c0_12] : memref<18x32xf32, #tpu.memory_space<vmem>>, vector<16x32xf32>
    %c0_13 = arith.constant 0 : index
    %c0_14 = arith.constant 0 : index
    %10 = vector.load %arg3[%c0_13, %c0_14] : memref<32x8xf32, #tpu.memory_space<vmem>>, vector<32x8xf32>
    %cst_15 = arith.constant dense<0.000000e+00> : vector<16x8xf32>
    %11 = tpu.matmul %9, %10, %cst_15 {dimension_numbers = #tpu.dot_dimension_numbers<[1], [0], [0], [1], [0, 0, 1, 1], [], []>} : vector<16x32xf32>, vector<32x8xf32>, vector<16x8xf32> -> vector<16x8xf32>
    %12 = arith.addf %8, %11 : vector<16x8xf32>
    %c2 = arith.constant 2 : index
    %c0_16 = arith.constant 0 : index
    %13 = vector.load %arg7[%c2, %c0_16] : memref<18x32xf32, #tpu.memory_space<vmem>>, vector<16x32xf32>
    %c0_17 = arith.constant 0 : index
    %c0_18 = arith.constant 0 : index
    %14 = vector.load %arg4[%c0_17, %c0_18] : memref<32x8xf32, #tpu.memory_space<vmem>>, vector<32x8xf32>
    %cst_19 = arith.constant dense<0.000000e+00> : vector<16x8xf32>
    %15 = tpu.matmul %13, %14, %cst_19 {dimension_numbers = #tpu.dot_dimension_numbers<[1], [0], [0], [1], [0, 0, 1, 1], [], []>} : vector<16x32xf32>, vector<32x8xf32>, vector<16x8xf32> -> vector<16x8xf32>
    %16 = arith.addf %12, %15 : vector<16x8xf32>
    %c0_20 = arith.constant 0 : index
    %c0_21 = arith.constant 0 : index
    %17 = vector.load %arg5[%c0_20, %c0_21] : memref<1x8xf32, #tpu.memory_space<vmem>>, vector<1x8xf32>
    %18 = vector.broadcast %17 : vector<1x8xf32> to vector<16x8xf32>
    %19 = arith.addf %16, %18 : vector<16x8xf32>
    %cst_22 = arith.constant 0.000000e+00 : f32
    %20 = vector.broadcast %cst_22 : f32 to vector<16x8xf32>
    %21 = arith.maximumf %19, %20 : vector<16x8xf32>
    %c0_23 = arith.constant 0 : index
    %c0_24 = arith.constant 0 : index
    %c0_25 = arith.constant 0 : index
    %22 = vector.load %arg6[%c0_23, %c0_24, %c0_25] : memref<1x16x8xf32, #tpu.memory_space<vmem>>, vector<1x16x8xf32>
    %23 = vector.shape_cast %22 : vector<1x16x8xf32> to vector<16x8xf32>
    %24 = vector.shape_cast %21 : vector<16x8xf32> to vector<1x16x8xf32>
    tpu.vector_store %arg6[%c0_23, %c0_24, %c0_25], %24 {strides = array<i32>} : memref<1x16x8xf32, #tpu.memory_space<vmem>>, vector<1x16x8xf32>,
    return
  }
  func.func @transform_0(%arg0: i32) -> (i32, i32, i32) {
    %c0_i32 = arith.constant 0 : i32
    %c0_i32_0 = arith.constant 0 : i32
    %c0_i32_1 = arith.constant 0 : i32
    return %arg0, %c0_i32, %c0_i32_0 : i32, i32, i32
  }
  func.func @transform_1(%arg0: i32) -> (i32, i32) {
    %c0_i32 = arith.constant 0 : i32
    %c0_i32_0 = arith.constant 0 : i32
    %c0_i32_1 = arith.constant 0 : i32
    return %c0_i32, %c0_i32_0 : i32, i32
  }
  func.func @transform_2(%arg0: i32) -> (i32, i32) {
    %c0_i32 = arith.constant 0 : i32
    %c0_i32_0 = arith.constant 0 : i32
    %c0_i32_1 = arith.constant 0 : i32
    return %c0_i32, %c0_i32_0 : i32, i32
  }
  func.func @transform_3(%arg0: i32) -> (i32, i32) {
    %c0_i32 = arith.constant 0 : i32
    %c0_i32_0 = arith.constant 0 : i32
    %c0_i32_1 = arith.constant 0 : i32
    return %c0_i32, %c0_i32_0 : i32, i32
  }
  func.func @transform_4(%arg0: i32) -> (i32, i32) {
    %c0_i32 = arith.constant 0 : i32
    %c0_i32_0 = arith.constant 0 : i32
    %c0_i32_1 = arith.constant 0 : i32
    return %c0_i32, %c0_i32_0 : i32, i32
  }
  func.func @transform_5(%arg0: i32) -> (i32, i32, i32) {
    %c0_i32 = arith.constant 0 : i32
    %c0_i32_0 = arith.constant 0 : i32
    %c0_i32_1 = arith.constant 0 : i32
    return %arg0, %c0_i32, %c0_i32_0 : i32, i32, i32
  }
}

</mosaic_0001>

<llo_original>
// kernel: temporal_forward.1
$region0: #{temporal_forward.1}
  #allocation0 [shape = 'u32[]', space=smem, size = 0x4, offset = 0x4, fixed_abs, tag = 'smem constant byte address 0x4 - core index']
  #allocation1 [shape = 'u32[144,128]{1,0:T(1,128)}', space=vmem, size = 0x12000, scoped, tag = 'internal scratch']
  #allocation2 [shape = 'f32[18,32]{1,0:T(8,128)}', space=vmem, size = 0x3000, scoped, tag = 'scratch operand']
  %s0 = inlined_call_operand.vmem [shape: f32[2,16,32], index: 0, kind: input, shape index: {}]
  %s1 = inlined_call_operand.vmem [shape: f32[32,8], index: 1, kind: input, shape index: {}]
  %s2 = inlined_call_operand.vmem [shape: f32[32,8], index: 2, kind: input, shape index: {}]
  %s3 = inlined_call_operand.vmem [shape: f32[32,8], index: 3, kind: input, shape index: {}]
  %s4 = inlined_call_operand.vmem [shape: f32[1,8], index: 4, kind: input, shape index: {}]
  %s5 = inlined_call_operand.vmem [shape: f32[2,16,8], index: 5, kind: output, shape index: {}]
  %s6 = sld [smem:[#allocation0]]
  $region53: #{temporal_forward.1} parent=0
    _
  %s8 = ssub.s32 1, %s6
  %s9 = scalar_select 0, %s8, %s6
  loop: start=0, step=1, limit=4
  $region2: #{temporal_forward.1} parent=0 // loop_pre_header
    _
  $region3: #{temporal_forward.1} parent=0 // loop_header
    %s11 = sphi 0, %s15
    %p12 = scmp.ge.s32.totalorder %s11, 4
    %s21 = sphi 0, %s23
    %s24 = sphi 0, %s21
    %s25 = sphi 0, %s24
    %s41 = sphi 0, %s25
    %s45 = sphi 0, %s45
    %s47 = sphi 0, %s45
    %s48 = sphi 0, %s47
    %s62 = sphi 0, %s48
    %s66 = sphi 0, %s66
    %s68 = sphi 0, %s66
    %s69 = sphi 0, %s68
    %s83 = sphi 0, %s69
    %s87 = sphi 0, %s87
    %s89 = sphi 0, %s87
    %s90 = sphi 0, %s89
    %s104 = sphi 0, %s90
    %s108 = sphi 0, %s108
    %s110 = sphi 0, %s108
    %s111 = sphi 0, %s110
    %s125 = sphi 0, %s111
    %s131 = sphi 0, %s133
    %s134 = sphi 0, %s131
    %s135 = sphi 0, %s134
    %s151 = sphi 0, %s135
  $region4: #{temporal_forward.1} parent=0 // loop_header_branch
    %14 = sbr.rel (%p12) target = $region8
  $region5: #{temporal_forward.1} parent=0 // loop_body
    %s16 = ssub.s32 %s11, 1
    %s17 = ssub.s32 %s11, 2
    %s18 = sadd.s32 %s11, 1
    %s19 = ssub.s32 %s11, %s18
    %p20 = scmp.eq.s32.totalorder %s19, 0
    %s22 = sadd.s32 %s21, 1
    %s23 = scalar_select %p20, %s21, %s22
    %p26 = pneg %p20
    %p27 = scmp.eq.s32.totalorder %s11, 1
    %p28 = por %p26, %p27
    %p29 = scmp.ne.s32.totalorder %s21, %s24
    %p30 = scmp.eq.s32.totalorder %s11, 0
    %p31 = por %p29, %p30
    %p32 = scmp.ne.s32.totalorder %s21, %s24
    %p33 = scmp.eq.s32.totalorder %s16, 1
    %p34 = por %p32, %p33
    %p35 = scmp.ne.s32.totalorder %s24, %s25
    %p36 = scmp.eq.s32.totalorder %s16, 0
    %p37 = por %p35, %p36
    %p38 = scmp.ne.s32.totalorder %s24, %s25
    %p39 = scmp.eq.s32.totalorder %s17, 1
    %p40 = por %p38, %p39
    %p42 = scmp.ne.s32.totalorder %s25, %s41
    %p43 = scmp.eq.s32.totalorder %s17, 0
    %p44 = por %p42, %p43
    %s46 = sadd.s32 %s45, 1
    %p49 = scmp.eq.s32.totalorder %s11, 1
    %p50 = scmp.ne.s32.totalorder %s45, %s47
    %p51 = scmp.eq.s32.totalorder %s11, 0
    %p52 = por %p50, %p51
    %p53 = scmp.ne.s32.totalorder %s45, %s47
    %p54 = scmp.eq.s32.totalorder %s16, 1
    %p55 = por %p53, %p54
    %p56 = scmp.ne.s32.totalorder %s47, %s48
    %p57 = scmp.eq.s32.totalorder %s16, 0
    %p58 = por %p56, %p57
    %p59 = scmp.ne.s32.totalorder %s47, %s48
    %p60 = scmp.eq.s32.totalorder %s17, 1
    %p61 = por %p59, %p60
    %p63 = scmp.ne.s32.totalorder %s48, %s62
    %p64 = scmp.eq.s32.totalorder %s17, 0
    %p65 = por %p63, %p64
    %s67 = sadd.s32 %s66, 1
    %p70 = scmp.eq.s32.totalorder %s11, 1
    %p71 = scmp.ne.s32.totalorder %s66, %s68
    %p72 = scmp.eq.s32.totalorder %s11, 0
    %p73 = por %p71, %p72
    %p74 = scmp.ne.s32.totalorder %s66, %s68
    %p75 = scmp.eq.s32.totalorder %s16, 1
    %p76 = por %p74, %p75
    %p77 = scmp.ne.s32.totalorder %s68, %s69
    %p78 = scmp.eq.s32.totalorder %s16, 0
    %p79 = por %p77, %p78
    %p80 = scmp.ne.s32.totalorder %s68, %s69
    %p81 = scmp.eq.s32.totalorder %s17, 1
    %p82 = por %p80, %p81
    %p84 = scmp.ne.s32.totalorder %s69, %s83
    %p85 = scmp.eq.s32.totalorder %s17, 0
    %p86 = por %p84, %p85
    %s88 = sadd.s32 %s87, 1
    %p91 = scmp.eq.s32.totalorder %s11, 1
    %p92 = scmp.ne.s32.totalorder %s87, %s89
    %p93 = scmp.eq.s32.totalorder %s11, 0
    %p94 = por %p92, %p93
    %p95 = scmp.ne.s32.totalorder %s87, %s89
    %p96 = scmp.eq.s32.totalorder %s16, 1
    %p97 = por %p95, %p96
    %p98 = scmp.ne.s32.totalorder %s89, %s90
    %p99 = scmp.eq.s32.totalorder %s16, 0
    %p100 = por %p98, %p99
    %p101 = scmp.ne.s32.totalorder %s89, %s90
    %p102 = scmp.eq.s32.totalorder %s17, 1
    %p103 = por %p101, %p102
    %p105 = scmp.ne.s32.totalorder %s90, %s104
    %p106 = scmp.eq.s32.totalorder %s17, 0
    %p107 = por %p105, %p106
    %s109 = sadd.s32 %s108, 1
    %p112 = scmp.eq.s32.totalorder %s11, 1
    %p113 = scmp.ne.s32.totalorder %s108, %s110
    %p114 = scmp.eq.s32.totalorder %s11, 0
    %p115 = por %p113, %p114
    %p116 = scmp.ne.s32.totalorder %s108, %s110
    %p117 = scmp.eq.s32.totalorder %s16, 1
    %p118 = por %p116, %p117
    %p119 = scmp.ne.s32.totalorder %s110, %s111
    %p120 = scmp.eq.s32.totalorder %s16, 0
    %p121 = por %p119, %p120
    %p122 = scmp.ne.s32.totalorder %s110, %s111
    %p123 = scmp.eq.s32.totalorder %s17, 1
    %p124 = por %p122, %p123
    %p126 = scmp.ne.s32.totalorder %s111, %s125
    %p127 = scmp.eq.s32.totalorder %s17, 0
    %p128 = por %p126, %p127
    %s129 = ssub.s32 %s11, %s18
    %p130 = scmp.eq.s32.totalorder %s129, 0
    %s132 = sadd.s32 %s131, 1
    %s133 = scalar_select %p130, %s131, %s132
    %p136 = pneg %p130
    %p137 = scmp.eq.s32.totalorder %s11, 1
    %p138 = por %p136, %p137
    %p139 = scmp.ne.s32.totalorder %s131, %s134
    %p140 = scmp.eq.s32.totalorder %s11, 0
    %p141 = por %p139, %p140
    %p142 = scmp.ne.s32.totalorder %s131, %s134
    %p143 = scmp.eq.s32.totalorder %s16, 1
    %p144 = por %p142, %p143
    %p145 = scmp.ne.s32.totalorder %s134, %s135
    %p146 = scmp.eq.s32.totalorder %s16, 0
    %p147 = por %p145, %p146
    %p148 = scmp.ne.s32.totalorder %s134, %s135
    %p149 = scmp.eq.s32.totalorder %s17, 1
    %p150 = por %p148, %p149
    %p152 = scmp.ne.s32.totalorder %s135, %s151
    %p153 = scmp.eq.s32.totalorder %s17, 0
    %p154 = por %p152, %p153
    %p155 = scmp.le.s32.totalorder 1, %s11
    %p156 = scmp.lt.s32.totalorder %s11, 3
    %p157 = pnand %p155, %p156
    %p158 = pneg %p157
    // Predicated region
    $region9: #{temporal_forward.1} parent=5 // pred_check
      _
    $region10: #{temporal_forward.1} parent=5 // pred_check_branch
      %160 = sbr.rel (%p157) target = $region12
    $region11: #{temporal_forward.1} parent=5 // pred_region
      %s161 = ssub.s32 %s11, 1
      // Predicated region
      $region13: #{temporal_forward.1} parent=11 // pred_check
        %p162 = pneg %p58
      $region14: #{temporal_forward.1} parent=11 // pred_check_branch
        %164 = sbr.rel (%p162) target = $region16
      $region15: #{temporal_forward.1} parent=11 // pred_region
        _
      $region16: #{temporal_forward.1} parent=11 // pred_fallthru
        _
      // Predicated region
      $region17: #{temporal_forward.1} parent=11 // pred_check
        %p165 = pneg %p79
      $region18: #{temporal_forward.1} parent=11 // pred_check_branch
        %167 = sbr.rel (%p165) target = $region20
      $region19: #{temporal_forward.1} parent=11 // pred_region
        _
      $region20: #{temporal_forward.1} parent=11 // pred_fallthru
        _
      // Predicated region
      $region21: #{temporal_forward.1} parent=11 // pred_check
        %p168 = pneg %p100
      $region22: #{temporal_forward.1} parent=11 // pred_check_branch
        %170 = sbr.rel (%p168) target = $region24
      $region23: #{temporal_forward.1} parent=11 // pred_region
        _
      $region24: #{temporal_forward.1} parent=11 // pred_fallthru
        _
      // Predicated region
      $region25: #{temporal_forward.1} parent=11 // pred_check
        %p171 = pneg %p121
      $region26: #{temporal_forward.1} parent=11 // pred_check_branch
        %173 = sbr.rel (%p171) target = $region28
      $region27: #{temporal_forward.1} parent=11 // pred_region
        _
      $region28: #{temporal_forward.1} parent=11 // pred_fallthru
        _
    $region12: #{temporal_forward.1} parent=5 // pred_fallthru
      _
    %p174 = scmp.lt.s32.totalorder %s11, 2
    // Predicated region
    $region29: #{temporal_forward.1} parent=5 // pred_check
      %p175 = pneg %p174
    $region30: #{temporal_forward.1} parent=5 // pred_check_branch
      %177 = sbr.rel (%p175) target = $region32
    $region31: #{temporal_forward.1} parent=5 // pred_region
      // Predicated region
      $region33: #{temporal_forward.1} parent=31 // pred_check
        %p178 = pneg %p31
      $region34: #{temporal_forward.1} parent=31 // pred_check_branch
        %180 = sbr.rel (%p178) target = $region36
      $region35: #{temporal_forward.1} parent=31 // pred_region
        %p181 = scmp.lt.s32.totalorder %s11, 1
        %s182 = scalar_select %p181, %s11, 1
        %s183 = smul.addr %s182, 2
        %s184 = smul.addr %s183, 8
        %s185 = scalar_lea.vmem %s0, %s184
      $region36: #{temporal_forward.1} parent=31 // pred_fallthru
        _
    $region32: #{temporal_forward.1} parent=5 // pred_fallthru
      _
    %p186 = scmp.le.s32.totalorder 1, %s11
    %p187 = scmp.lt.s32.totalorder %s11, 3
    %p188 = pnand %p186, %p187
    %p189 = pneg %p188
    // Predicated region
    $region37: #{temporal_forward.1} parent=5 // pred_check
      _
    $region38: #{temporal_forward.1} parent=5 // pred_check_branch
      %191 = sbr.rel (%p188) target = $region40
    $region39: #{temporal_forward.1} parent=5 // pred_region
      %s192 = ssub.s32 %s11, 1
      %p193 = scmp.lt.s32.totalorder %s16, 1
      %s194 = scalar_select %p193, %s16, 1
      %s195 = smul.addr %s194, 2
      %s196 = smul.addr %s195, 8
      %s197 = scalar_lea.vmem %s0, %s196
      %p198 = pneg %p37
      %p199 = pneg %p34
      %p200 = pneg %p58
      %p201 = pneg %p55
      %p202 = pneg %p79
      %p203 = pneg %p76
      %p204 = pneg %p100
      %p205 = pneg %p97
      %p206 = pneg %p121
      %p207 = pneg %p118
      %p208 = pneg %p147
      %p209 = pneg %p144
      %p210 = scmp.lt.s32.totalorder %s16, 1
      %s211 = scalar_select %p210, %s16, 1
      %s212 = smul.addr %s211, 2
      %s213 = smul.addr %s212, 8
      %s214 = scalar_lea.vmem %s5, %s213
      %p215 = scmp.lt.s32.totalorder %s16, 1
      %s216 = scalar_select %p215, %s16, 1
      %s217 = smul.addr %s216, 2
      %s218 = smul.addr %s217, 8
      %s219 = scalar_lea.vmem %s0, %s218
      %p220 = scmp.lt.s32.totalorder %s16, 1
      %s221 = scalar_select %p220, %s16, 1
      %s222 = smul.addr %s221, 2
      %s223 = smul.addr %s222, 8
      %s224 = scalar_lea.vmem %s5, %s223
      %vm225 = vcmask 253952
      %226 = vst.msk [vmem:[#allocation2] sm:$0x1] %vm225, 0.0
      %227 = vst.msk [vmem:[#allocation2 + $0x11] sm:$0x1] %vm225, 0.0
      %v228 = vld [vmem:[%s219] sm:$0xff]
      %v229 = vld [vmem:[%s219 + $0x8] sm:$0xff]
      %vm230 = vcmask 261120
      %231 = vst.msk [vmem:[#allocation2 + $0x1] sm:$0xff] %vm230, %v228
      %232 = vst.msk [vmem:[#allocation2 + $0x9] sm:$0xff] %vm230, %v229
      %v233 = vld [vmem:[#allocation2] sm:$0xff]
      %v234 = vld [vmem:[#allocation2 + $0x8] sm:$0xff]
      %v235 = vld [vmem:[%s1] sm:$0xff]
      %v236 = vld [vmem:[%s1 + $0x8] sm:$0xff]
      %v237 = vld [vmem:[%s1 + $0x10] sm:$0xff]
      %v238 = vld [vmem:[%s1 + $0x18] sm:$0xff]
      %v239 = vld [vmem:[#allocation2 + $0x1] sm:$0xff]
      %v240 = vld [vmem:[#allocation2 + $0x9] sm:$0xff]
      %v241 = vld [vmem:[%s2] sm:$0xff]
      %v242 = vld [vmem:[%s2 + $0x8] sm:$0xff]
      %v243 = vld [vmem:[%s2 + $0x10] sm:$0xff]
      %v244 = vld [vmem:[%s2 + $0x18] sm:$0xff]
      %v246 = vsel %vm230, %v239, 0
      %v249 = vsel %vm230, %v240, 0
      %251 = vmatprep.subr.mxu0 0.0
      %252 = vmatpush1.msra.mxu0 0.0
      %253 = vmatprep.subr.mxu0 0.0
      %254 = vmatpush1.msra.mxu0 0.0
      %255 = vmatprep.subr.mxu0 0.0
      %256 = vmatpush1.msra.mxu0 0.0
      %257 = vmatprep.subr.mxu0 0.0
      %258 = vmatpush1.msra.mxu0 0.0
      %259 = vmatprep.subr.mxu0 0.0
      %260 = vmatpush1.msra.mxu0 0.0
      %261 = vmatprep.subr.mxu0 0.0
      %262 = vmatpush1.msra.mxu0 0.0
      %263 = vmatprep.subr.mxu0 0.0
      %264 = vmatpush1.msra.mxu0 0.0
      %265 = vmatprep.subr.mxu0 0.0
      %266 = vmatpush1.msra.mxu0 0.0
      %267 = vmatprep.subr.mxu0 0.0
      %268 = vmatpush1.msra.mxu0 0.0
      %269 = vmatprep.subr.mxu0 0.0
      %270 = vmatpush1.msra.mxu0 0.0
      %271 = vmatprep.subr.mxu0 0.0
      %272 = vmatpush1.msra.mxu0 0.0
      %273 = vmatprep.subr.mxu0 0.0
      %274 = vmatpush1.msra.mxu0 0.0
      %275 = vmatprep.subr.mxu0 0.0
      %276 = vmatpush1.msra.mxu0 %v244
      %277 = vmatprep.subr.mxu0 0.0
      %278 = vmatpush1.msra.mxu0 %v243
      %279 = vmatprep.subr.mxu0 0.0
      %280 = vmatpush1.msra.mxu0 %v242
      %281 = vmatprep.subr.mxu0 0.0
      %282 = vmatpush1.msra.mxu0 %v241
      %283 = vmatprep.subr.mxu0 0.0
      %284 = vmatpush2.msra.mxu0 0.0
      %285 = vmatprep.subr.mxu0 0.0
      %286 = vmatpush2.msra.mxu0 0.0
      %287 = vmatprep.subr.mxu0 0.0
      %288 = vmatpush2.msra.mxu0 0.0
      %289 = vmatprep.subr.mxu0 0.0
      %290 = vmatpush2.msra.mxu0 0.0
      %291 = vmatprep.subr.mxu0 0.0
      %292 = vmatpush2.msra.mxu0 0.0
      %293 = vmatprep.subr.mxu0 0.0
      %294 = vmatpush2.msra.mxu0 0.0
      %295 = vmatprep.subr.mxu0 0.0
      %296 = vmatpush2.msra.mxu0 0.0
      %297 = vmatprep.subr.mxu0 0.0
      %298 = vmatpush2.msra.mxu0 0.0
      %299 = vmatprep.subr.mxu0 0.0
      %300 = vmatpush2.msra.mxu0 0.0
      %301 = vmatprep.subr.mxu0 0.0
      %302 = vmatpush2.msra.mxu0 0.0
      %303 = vmatprep.subr.mxu0 0.0
      %304 = vmatpush2.msra.mxu0 0.0
      %305 = vmatprep.subr.mxu0 0.0
      %306 = vmatpush2.msra.mxu0 0.0
      %307 = vmatprep.subr.mxu0 0.0
      %308 = vmatpush2.msra.mxu0 0.0
      %309 = vmatprep.subr.mxu0 0.0
      %310 = vmatpush2.msra.mxu0 0.0
      %311 = vmatprep.subr.mxu0 0.0
      %312 = vmatpush2.msra.mxu0 0.0
      %313 = vmatprep.subr.mxu0 0.0
      %314 = vmatpush2.msra.mxu0 0.0
      %315 = vmatprep.mubr.f32.mxu0 0.0
      %316 = vmatmul.mubr.f32.gmra.mxu0 %v246
      %v317 = vpop.f32.mrf.mxu0
      %v318 = vadd.f32 0.0, %v317
      %v319 = vpop.f32.mrf.mxu0
      %320 = vmatprep.mubr.f32.mxu0 0.0
      %321 = vmatmul.mubr.f32.gmra.mxu0 %v249
      %v322 = vpop.f32.mrf.mxu0
      %v323 = vadd.f32 0.0, %v322
      %v324 = vpop.f32.mrf.mxu0
      %325 = vdwg.mxu0
      %v327 = vsel %vm230, %v233, 0
      %v330 = vsel %vm230, %v234, 0
      %332 = vmatprep.subr.mxu0 0.0
      %333 = vmatpush1.msra.mxu0 0.0
      %334 = vmatprep.subr.mxu0 0.0
      %335 = vmatpush1.msra.mxu0 0.0
      %336 = vmatprep.subr.mxu0 0.0
      %337 = vmatpush1.msra.mxu0 0.0
      %338 = vmatprep.subr.mxu0 0.0
      %339 = vmatpush1.msra.mxu0 0.0
      %340 = vmatprep.subr.mxu0 0.0
      %341 = vmatpush1.msra.mxu0 0.0
      %342 = vmatprep.subr.mxu0 0.0
      %343 = vmatpush1.msra.mxu0 0.0
      %344 = vmatprep.subr.mxu0 0.0
      %345 = vmatpush1.msra.mxu0 0.0
      %346 = vmatprep.subr.mxu0 0.0
      %347 = vmatpush1.msra.mxu0 0.0
      %348 = vmatprep.subr.mxu0 0.0
      %349 = vmatpush1.msra.mxu0 0.0
      %350 = vmatprep.subr.mxu0 0.0
      %351 = vmatpush1.msra.mxu0 0.0
      %352 = vmatprep.subr.mxu0 0.0
      %353 = vmatpush1.msra.mxu0 0.0
      %354 = vmatprep.subr.mxu0 0.0
      %355 = vmatpush1.msra.mxu0 0.0
      %356 = vmatprep.subr.mxu0 0.0
      %357 = vmatpush1.msra.mxu0 %v238
      %358 = vmatprep.subr.mxu0 0.0
      %359 = vmatpush1.msra.mxu0 %v237
      %360 = vmatprep.subr.mxu0 0.0
      %361 = vmatpush1.msra.mxu0 %v236
      %362 = vmatprep.subr.mxu0 0.0
      %363 = vmatpush1.msra.mxu0 %v235
      %364 = vmatprep.subr.mxu0 0.0
      %365 = vmatpush2.msra.mxu0 0.0
      %366 = vmatprep.subr.mxu0 0.0
      %367 = vmatpush2.msra.mxu0 0.0
      %368 = vmatprep.subr.mxu0 0.0
      %369 = vmatpush2.msra.mxu0 0.0
      %370 = vmatprep.subr.mxu0 0.0
      %371 = vmatpush2.msra.mxu0 0.0
      %372 = vmatprep.subr.mxu0 0.0
      %373 = vmatpush2.msra.mxu0 0.0
      %374 = vmatprep.subr.mxu0 0.0
      %375 = vmatpush2.msra.mxu0 0.0
      %376 = vmatprep.subr.mxu0 0.0
      %377 = vmatpush2.msra.mxu0 0.0
      %378 = vmatprep.subr.mxu0 0.0
      %379 = vmatpush2.msra.mxu0 0.0
      %380 = vmatprep.subr.mxu0 0.0
      %381 = vmatpush2.msra.mxu0 0.0
      %382 = vmatprep.subr.mxu0 0.0
      %383 = vmatpush2.msra.mxu0 0.0
      %384 = vmatprep.subr.mxu0 0.0
      %385 = vmatpush2.msra.mxu0 0.0
      %386 = vmatprep.subr.mxu0 0.0
      %387 = vmatpush2.msra.mxu0 0.0
      %388 = vmatprep.subr.mxu0 0.0
      %389 = vmatpush2.msra.mxu0 0.0
      %390 = vmatprep.subr.mxu0 0.0
      %391 = vmatpush2.msra.mxu0 0.0
      %392 = vmatprep.subr.mxu0 0.0
      %393 = vmatpush2.msra.mxu0 0.0
      %394 = vmatprep.subr.mxu0 0.0
      %395 = vmatpush2.msra.mxu0 0.0
      %396 = vmatprep.mubr.f32.mxu0 0.0
      %397 = vmatmul.mubr.f32.gmra.mxu0 %v327
      %v398 = vpop.f32.mrf.mxu0
      %v399 = vadd.f32 %v318, %v398
      %v400 = vpop.f32.mrf.mxu0
      %401 = vmatprep.mubr.f32.mxu0 0.0
      %402 = vmatmul.mubr.f32.gmra.mxu0 %v330
      %v403 = vpop.f32.mrf.mxu0
      %v404 = vadd.f32 %v323, %v403
      %v405 = vpop.f32.mrf.mxu0
      %406 = vdwg.mxu0
      %v407 = vld [vmem:[#allocation2 + $0x2] sm:$0xff]
      %v408 = vld [vmem:[#allocation2 + $0xa] sm:$0xff]
      %v409 = vld [vmem:[%s3] sm:$0xff]
      %v410 = vld [vmem:[%s3 + $0x8] sm:$0xff]
      %v411 = vld [vmem:[%s3 + $0x10] sm:$0xff]
      %v412 = vld [vmem:[%s3 + $0x18] sm:$0xff]
      %v414 = vsel %vm230, %v407, 0
      %v417 = vsel %vm230, %v408, 0
      %419 = vmatprep.subr.mxu0 0.0
      %420 = vmatpush1.msra.mxu0 0.0
      %421 = vmatprep.subr.mxu0 0.0
      %422 = vmatpush1.msra.mxu0 0.0
      %423 = vmatprep.subr.mxu0 0.0
      %424 = vmatpush1.msra.mxu0 0.0
      %425 = vmatprep.subr.mxu0 0.0
      %426 = vmatpush1.msra.mxu0 0.0
      %427 = vmatprep.subr.mxu0 0.0
      %428 = vmatpush1.msra.mxu0 0.0
      %429 = vmatprep.subr.mxu0 0.0
      %430 = vmatpush1.msra.mxu0 0.0
      %431 = vmatprep.subr.mxu0 0.0
      %432 = vmatpush1.msra.mxu0 0.0
      %433 = vmatprep.subr.mxu0 0.0
      %434 = vmatpush1.msra.mxu0 0.0
      %435 = vmatprep.subr.mxu0 0.0
      %436 = vmatpush1.msra.mxu0 0.0
      %437 = vmatprep.subr.mxu0 0.0
      %438 = vmatpush1.msra.mxu0 0.0
      %439 = vmatprep.subr.mxu0 0.0
      %440 = vmatpush1.msra.mxu0 0.0
      %441 = vmatprep.subr.mxu0 0.0
      %442 = vmatpush1.msra.mxu0 0.0
      %443 = vmatprep.subr.mxu0 0.0
      %444 = vmatpush1.msra.mxu0 %v412
      %445 = vmatprep.subr.mxu0 0.0
      %446 = vmatpush1.msra.mxu0 %v411
      %447 = vmatprep.subr.mxu0 0.0
      %448 = vmatpush1.msra.mxu0 %v410
      %449 = vmatprep.subr.mxu0 0.0
      %450 = vmatpush1.msra.mxu0 %v409
      %451 = vmatprep.subr.mxu0 0.0
      %452 = vmatpush2.msra.mxu0 0.0
      %453 = vmatprep.subr.mxu0 0.0
      %454 = vmatpush2.msra.mxu0 0.0
      %455 = vmatprep.subr.mxu0 0.0
      %456 = vmatpush2.msra.mxu0 0.0
      %457 = vmatprep.subr.mxu0 0.0
      %458 = vmatpush2.msra.mxu0 0.0
      %459 = vmatprep.subr.mxu0 0.0
      %460 = vmatpush2.msra.mxu0 0.0
      %461 = vmatprep.subr.mxu0 0.0
      %462 = vmatpush2.msra.mxu0 0.0
      %463 = vmatprep.subr.mxu0 0.0
      %464 = vmatpush2.msra.mxu0 0.0
      %465 = vmatprep.subr.mxu0 0.0
      %466 = vmatpush2.msra.mxu0 0.0
      %467 = vmatprep.subr.mxu0 0.0
      %468 = vmatpush2.msra.mxu0 0.0
      %469 = vmatprep.subr.mxu0 0.0
      %470 = vmatpush2.msra.mxu0 0.0
      %471 = vmatprep.subr.mxu0 0.0
      %472 = vmatpush2.msra.mxu0 0.0
      %473 = vmatprep.subr.mxu0 0.0
      %474 = vmatpush2.msra.mxu0 0.0
      %475 = vmatprep.subr.mxu0 0.0
      %476 = vmatpush2.msra.mxu0 0.0
      %477 = vmatprep.subr.mxu0 0.0
      %478 = vmatpush2.msra.mxu0 0.0
      %479 = vmatprep.subr.mxu0 0.0
      %480 = vmatpush2.msra.mxu0 0.0
      %481 = vmatprep.subr.mxu0 0.0
      %482 = vmatpush2.msra.mxu0 0.0
      %483 = vmatprep.mubr.f32.mxu0 0.0
      %484 = vmatmul.mubr.f32.gmra.mxu0 %v414
      %v485 = vpop.f32.mrf.mxu0
      %v486 = vadd.f32 0.0, %v485
      %v487 = vpop.f32.mrf.mxu0
      %488 = vmatprep.mubr.f32.mxu0 0.0
      %489 = vmatmul.mubr.f32.gmra.mxu0 %v417
      %v490 = vpop.f32.mrf.mxu0
      %v491 = vadd.f32 0.0, %v490
      %v492 = vpop.f32.mrf.mxu0
      %493 = vdwg.mxu0
      %v494 = vadd.f32 %v399, %v486
      %v495 = vadd.f32 %v404, %v491
      %v496 = vld [vmem:[%s4] sm:$0x1]
      %v498 = vlaneseq
      %v499 = vshrl.u32 %v498, 7
      %v500 = vsub.s32 0, %v499
      %v501 = vrot.slane %v496, %v500
      %v503 = vadd.f32 %v494, %v501
      %v504 = vadd.f32 %v495, %v501
      %v505 = vmax.f32 %v503, 0.0
      %v506 = vmax.f32 %v504, 0.0
      %vm507 = vcmask 64512
      %508 = vst.msk [vmem:[%s224] sm:$0xff] %vm507, %v505
      %509 = vst.msk [vmem:[%s224 + $0x8] sm:$0xff] %vm507, %v506
      %p510 = scmp.lt.s32.totalorder %s16, 1
      %s511 = scalar_select %p510, %s16, 1
      %s512 = smul.addr %s511, 2
      %s513 = smul.addr %s512, 8
      %s514 = scalar_lea.vmem %s5, %s513
      // Predicated region
      $region41: #{temporal_forward.1} parent=39 // pred_check
        %p515 = pneg %p144
      $region42: #{temporal_forward.1} parent=39 // pred_check_branch
        %517 = sbr.rel (%p515) target = $region44
      $region43: #{temporal_forward.1} parent=39 // pred_region
        _
      $region44: #{temporal_forward.1} parent=39 // pred_fallthru
        _
    $region40: #{temporal_forward.1} parent=5 // pred_fallthru
      _
    %p518 = scmp.le.s32.totalorder 2, %s11
    // Predicated region
    $region45: #{temporal_forward.1} parent=5 // pred_check
      %p519 = pneg %p518
    $region46: #{temporal_forward.1} parent=5 // pred_check_branch
      %521 = sbr.rel (%p519) target = $region48
    $region47: #{temporal_forward.1} parent=5 // pred_region
      %s522 = ssub.s32 %s11, 2
      // Predicated region
      $region49: #{temporal_forward.1} parent=47 // pred_check
        %p523 = pneg %p150
      $region50: #{temporal_forward.1} parent=47 // pred_check_branch
        %525 = sbr.rel (%p523) target = $region52
      $region51: #{temporal_forward.1} parent=47 // pred_region
        %p526 = scmp.lt.s32.totalorder %s17, 1
        %s527 = scalar_select %p526, %s17, 1
        %s528 = smul.addr %s527, 2
        %s529 = smul.addr %s528, 8
        %s530 = scalar_lea.vmem %s5, %s529
      $region52: #{temporal_forward.1} parent=47 // pred_fallthru
        _
    $region48: #{temporal_forward.1} parent=5 // pred_fallthru
      _
  $region6: #{temporal_forward.1} parent=0 // loop_footer
    %s15 = sadd.s32 1, %s11
  $region7: #{temporal_forward.1} parent=0 // loop_footer_branch
    %10 = sbr.rel target = $region3
  $region8: #{temporal_forward.1} parent=0 // loop_exit
    _

</llo_original>
